<compile_context>
chip_gen: v7x
topology: tpu7x:2x2x1
jax: 0.10.0
libtpu: 0.0.40
codegen_flags: <defaults>
</compile_context>

<pallas_src>
import functools

import jax
import jax.numpy as jnp
from jax.experimental import pallas as pl
from jax.experimental.pallas import tpu as pltpu


def _focal_loss_kernel(logits_ref, side_ref, out_ref, *,
                       gamma, n_rows, tile_n, tiles_per_split):
    s = pl.program_id(0)          # batch split (megacore-parallel on 2-TC chips)
    j = pl.program_id(1)          # tile index inside the split (reduction axis)

    @pl.when(j == 0)
    def _():
        out_ref[...] = jnp.zeros_like(out_ref)

    x = logits_ref[...].astype(jnp.float32)        # (tile_n, C)
    side = side_ref[...]                           # (tile_n, 2) f32
    x_t = side[:, 0:1]                             # target logit (gathered in wrapper)
    alpha_t = side[:, 1:2]                         # per-sample alpha (gathered in wrapper)

    # numerically stable softmax statistics (the only full-width work left)
    m = jnp.max(x, axis=-1, keepdims=True)                         # (tile_n, 1)
    se = jnp.sum(jnp.exp(x - m), axis=-1, keepdims=True)           # (tile_n, 1)
    log_se = jnp.log(se)

    z_t = x_t - m
    ce = log_se - z_t                 # -log_softmax at target
    p_t = jnp.exp(z_t) / se           # independent of log_se (parallel tail); exact divide
    q = jnp.maximum(1.0 - p_t, 0.0)

    g = float(gamma)
    if g.is_integer() and 0.0 <= g <= 16.0:
        w = jnp.ones_like(q)
        for _ in range(int(g)):       # VALU multiplies instead of EUP pow (log+exp)
            w = w * q
    else:
        w = jnp.power(q, g)           # fallback for non-integer gamma (q clamped >= 0)
    focal = w * (alpha_t * ce)                                      # (tile_n, 1)

    # mask rows beyond the true batch size (partial edge tile); select AFTER focal so
    # NaN/inf from undefined padding never propagates into the sum.
    logical_tile = s * tiles_per_split + j
    row_ids = logical_tile * tile_n + jax.lax.broadcasted_iota(
        jnp.int32, focal.shape, 0)
    focal = jnp.where(row_ids < n_rows, focal, 0.0)

    # splat-accumulate this tile's scalar sum into the split's (8,128) block
    out_ref[...] = out_ref[...] + jnp.sum(focal)


def _tpu_generation_info():
    """(vmem_capacity_bytes, has_two_tensorcores) with safe fallbacks."""
    vmem_cap = 128 * 2**20
    two_cores = False
    try:
        info = pltpu.get_tpu_info()
        vmem_cap = int(getattr(info, "vmem_capacity_bytes", vmem_cap))
    except Exception:
        pass
    try:
        kind = jax.devices()[0].device_kind.lower()
        two_cores = ("v7" in kind) or ("7x" in kind)
    except Exception:
        pass
    if vmem_cap <= 64 * 2**20:        # 64 MiB/TC parts are the 2-TC generation
        two_cores = True
    return vmem_cap, two_cores


def weighted_focal_loss(inputs, targets, alpha=None, gamma=2,
                        target_tile_bytes=2 * 2**20, num_splits=None):
    """inputs: (N, C) logits (streamed in their source dtype, e.g. bf16);
       targets: (N,) int class ids; alpha: (C,) per-class weights or None."""
    N, C = inputs.shape
    itemsize = jnp.dtype(inputs.dtype).itemsize
    sub = {4: 8, 2: 16, 1: 32}.get(itemsize, 8)     # sublane multiple for logits dtype

    # --- wrapper-side gathers (tiny, O(N) elements): target logit + alpha --------
    tgt = targets.astype(jnp.int32)
    x_t = jnp.take_along_axis(inputs, tgt[:, None], axis=1).astype(jnp.float32)
    if alpha is None:
        a_t = jnp.ones((N, 1), jnp.float32)
    else:
        a_t = jnp.asarray(alpha, jnp.float32)[tgt][:, None]
    side = jnp.concatenate([x_t, a_t], axis=1)      # (N, 2) f32 side stream

    # --- generation-aware budgets -------------------------------------------------
    vmem_cap, two_cores = _tpu_generation_info()
    vmem_budget = min(int(0.75 * vmem_cap), 100 * 2**20)   # ~48 MiB on v7x, 96 MiB v5e/v6e
    margin = 2 * 2**20                                     # compiler-internal scratch

    c_pad = -(-C // 128) * 128                 # lane-padded class dim in VMEM
    # per-row VMEM cost: double-buffered logits + side blocks (lane/sublane padded)
    # plus ~3 f32 tile-wide compute intermediates inside the kernel.
    per_row_bytes = 2 * (c_pad * itemsize + 128 * 4) + 3 * c_pad * 4

    max_rows = max(sub, ((vmem_budget - margin) // per_row_bytes) // sub * sub)
    want_rows = max(sub, target_tile_bytes // (c_pad * itemsize))
    tile = min(int(want_rows), int(max_rows))
    tile = max(sub, (tile // sub) * sub)
    if N <= sub:
        tile = N                                   # single full-height block
    else:
        tile = min(tile, (N // sub) * sub)

    total_tiles = -(-N // tile)

    # --- megacore split: 2 only on 2-TC chips and only if it divides evenly -------
    if num_splits is None:
        num_splits = 2 if two_cores else 1
    splits = max(1, min(int(num_splits), total_tiles))
    if total_tiles % splits != 0:
        splits = 1                                 # never create clamped duplicate tiles
    tiles_per_split = total_tiles // splits

    # --- VMEM request from padded block sizes -------------------------------------
    workset = tile * per_row_bytes + 2 * 8 * 128 * splits * 4
    vmem_limit = int(min(vmem_budget, max(24 * 2**20, workset + margin)))

    def tile_map(s, j):
        return (s * tiles_per_split + j, 0)

    kernel = functools.partial(
        _focal_loss_kernel, gamma=gamma, n_rows=N, tile_n=tile,
        tiles_per_split=tiles_per_split)

    partials = pl.pallas_call(
        kernel,
        out_shape=jax.ShapeDtypeStruct((8, 128 * splits), jnp.float32),
        grid=(splits, tiles_per_split),
        in_specs=[
            pl.BlockSpec((tile, C), tile_map),     # logits tile (source dtype, e.g. bf16)
            pl.BlockSpec((tile, 2), tile_map),     # [x_t, alpha_t] f32 side tile
        ],
        out_specs=pl.BlockSpec((8, 128), lambda s, j: (0, s)),
        compiler_params=pltpu.CompilerParams(
            dimension_semantics=("parallel", "arbitrary"),
            vmem_limit_bytes=vmem_limit),
    )(inputs, side)

    # each split's (8,128) block holds its partial sum replicated; combine + mean
    return jnp.sum(partials[0, ::128]) / jnp.float32(N)


def _reference(inputs, targets, alpha, gamma):
    x = inputs.astype(jnp.float32)
    logp = jax.nn.log_softmax(x, axis=1)
    n = targets.shape[0]
    ce = -logp[jnp.arange(n), targets]
    p_t = jnp.exp(logp)[jnp.arange(n), targets]
    w = ce if alpha is None else jnp.asarray(alpha, jnp.float32)[targets] * ce
    return jnp.mean((1.0 - p_t) ** gamma * w)


if __name__ == "__main__":
    key = jax.random.PRNGKey(0)
    k1, k2, k3, k4, k5, k6 = jax.random.split(key, 6)

    # Case 1: tiny shapes matching the module's unit test (single block, 1 split).
    N1, C1 = 8, 32
    x1 = jax.random.normal(k1, (N1, C1), dtype=jnp.float32)
    t1 = jax.random.randint(k2, (N1,), 0, C1, dtype=jnp.int32)
    alpha1 = 0.25 + 0.75 * (jnp.arange(C1, dtype=jnp.float32) / (C1 - 1))
    loss1 = weighted_focal_loss(x1, t1, alpha=alpha1, gamma=2)
    jax.block_until_ready(loss1)
    ref1 = _reference(x1, t1, alpha1, 2)
    assert jnp.allclose(loss1, ref1, rtol=2e-4, atol=1e-6), (loss1, ref1)

    # Case 2: bf16 logits streamed as bf16, 4 tiles with a masked remainder,
    # explicit 2-way split (kept only because it divides evenly), alpha=None.
    N2, C2 = 200, 128
    x2 = jax.random.normal(k3, (N2, C2), dtype=jnp.float32).astype(jnp.bfloat16)
    t2 = jax.random.randint(k4, (N2,), 0, C2, dtype=jnp.int32)
    loss2 = weighted_focal_loss(x2, t2, alpha=None, gamma=2,
                                target_tile_bytes=16 * 1024, num_splits=2)
    jax.block_until_ready(loss2)
    ref2 = _reference(x2, t2, None, 2)
    assert jnp.allclose(loss2, ref2, rtol=2e-4, atol=1e-6), (loss2, ref2)

    # Case 3: fractional gamma path (jnp.power fallback with clamped base).
    N3, C3 = 32, 64
    x3 = jax.random.normal(k5, (N3, C3), dtype=jnp.float32)
    t3 = jax.random.randint(k6, (N3,), 0, C3, dtype=jnp.int32)
    alpha3 = 0.5 + 0.5 * (jnp.arange(C3, dtype=jnp.float32) / (C3 - 1))
    loss3 = weighted_focal_loss(x3, t3, alpha=alpha3, gamma=1.5)
    jax.block_until_ready(loss3)
    ref3 = _reference(x3, t3, alpha3, 1.5)
    assert jnp.allclose(loss3, ref3, rtol=2e-4, atol=1e-6), (loss3, ref3)

    print("KERNEL_OK")
</pallas_src>

<mosaic_0001>
module attributes {stable_mosaic.version = 11 : i64} {
  func.func @_focal_loss_kernel(%arg0: i32, %arg1: i32, %arg2: memref<8x32xf32, #tpu.memory_space<vmem>>, %arg3: memref<8x2xf32, #tpu.memory_space<vmem>>, %arg4: memref<8x128xf32, #tpu.memory_space<vmem>>) attributes {dimension_semantics = [#tpu.dimension_semantics<parallel>, #tpu.dimension_semantics<arbitrary>], iteration_bounds = array<i64: 1, 1>, scalar_prefetch = 0 : i64, scratch_operands = 0 : i64, tpu.core_type = #tpu.core_type<tc>, window_params = [{transform_indices = @transform_0, window_bounds = array<i64: 8, 32>}, {transform_indices = @transform_1, window_bounds = array<i64: 8, 2>}, {transform_indices = @transform_2, window_bounds = array<i64: 8, 128>}]} {
    %c0_i32 = arith.constant 0 : i32
    %0 = arith.cmpi eq, %arg1, %c0_i32 : i32
    %1 = arith.extui %0 : i1 to i32
    %c0_i32_0 = arith.constant 0 : i32
    %2 = arith.cmpi ne, %1, %c0_i32_0 : i32
    scf.if %2 {
      %cst_15 = arith.constant 0.000000e+00 : f32
      %46 = vector.broadcast %cst_15 : f32 to vector<8x128xf32>
      %c0_16 = arith.constant 0 : index
      %c0_17 = arith.constant 0 : index
      %47 = vector.load %arg4[%c0_16, %c0_17] : memref<8x128xf32, #tpu.memory_space<vmem>>, vector<8x128xf32>
      tpu.vector_store %arg4[%c0_16, %c0_17], %46 {strides = array<i32>} : memref<8x128xf32, #tpu.memory_space<vmem>>, vector<8x128xf32>,
    } else {
    }
    %c0 = arith.constant 0 : index
    %c0_1 = arith.constant 0 : index
    %3 = vector.load %arg2[%c0, %c0_1] : memref<8x32xf32, #tpu.memory_space<vmem>>, vector<8x32xf32>
    %c0_2 = arith.constant 0 : index
    %c0_3 = arith.constant 0 : index
    %4 = vector.load %arg3[%c0_2, %c0_3] : memref<8x2xf32, #tpu.memory_space<vmem>>, vector<8x2xf32>
    %5 = vector.extract_strided_slice %4 {offsets = [0, 0], sizes = [8, 1], strides = [1, 1]} : vector<8x2xf32> to vector<8x1xf32>
    %6 = vector.extract_strided_slice %4 {offsets = [0, 1], sizes = [8, 1], strides = [1, 1]} : vector<8x2xf32> to vector<8x1xf32>
    %cst = arith.constant dense<0xFF800000> : vector<8xf32>
    %7 = vector.multi_reduction <maximumf>, %3, %cst [1] : vector<8x32xf32> to vector<8xf32>
    %8 = vector.shape_cast %7 : vector<8xf32> to vector<8x1xf32>
    %9 = vector.broadcast %8 : vector<8x1xf32> to vector<8x32xf32>
    %10 = arith.subf %3, %9 : vector<8x32xf32>
    %11 = math.exp %10 : vector<8x32xf32>
    %cst_4 = arith.constant dense<0.000000e+00> : vector<8xf32>
    %12 = vector.multi_reduction <add>, %11, %cst_4 [1] : vector<8x32xf32> to vector<8xf32>
    %13 = vector.shape_cast %12 : vector<8xf32> to vector<8x1xf32>
    %14 = math.log %13 : vector<8x1xf32>
    %15 = arith.subf %5, %8 : vector<8x1xf32>
    %16 = arith.subf %14, %15 : vector<8x1xf32>
    %17 = math.exp %15 : vector<8x1xf32>
    %18 = arith.divf %17, %13 : vector<8x1xf32>
    %cst_5 = arith.constant 1.000000e+00 : f32
    %19 = vector.broadcast %cst_5 : f32 to vector<8x1xf32>
    %20 = arith.subf %19, %18 : vector<8x1xf32>
    %cst_6 = arith.constant 0.000000e+00 : f32
    %21 = vector.broadcast %cst_6 : f32 to vector<8x1xf32>
    %22 = arith.maximumf %20, %21 : vector<8x1xf32>
    %cst_7 = arith.constant 1.000000e+00 : f32
    %23 = vector.broadcast %cst_7 : f32 to vector<8x1xf32>
    %24 = arith.mulf %23, %22 : vector<8x1xf32>
    %25 = arith.mulf %24, %22 : vector<8x1xf32>
    %26 = arith.mulf %6, %16 : vector<8x1xf32>
    %27 = arith.mulf %25, %26 : vector<8x1xf32>
    %c1_i32 = arith.constant 1 : i32
    %28 = arith.muli %arg0, %c1_i32 : i32
    %29 = arith.addi %28, %arg1 : i32
    %c8_i32 = arith.constant 8 : i32
    %30 = arith.muli %29, %c8_i32 : i32
    %31 = tpu.iota {dimensions = array<i32: 0>} : vector<8x1xi32>
    %32 = vector.broadcast %30 : i32 to vector<8x1xi32>
    %33 = arith.addi %32, %31 : vector<8x1xi32>
    %c8_i32_8 = arith.constant 8 : i32
    %34 = vector.broadcast %c8_i32_8 : i32 to vector<8x1xi32>
    %35 = arith.cmpi slt, %33, %34 : vector<8x1xi32>
    %cst_9 = arith.constant 0.000000e+00 : f32
    %36 = vector.broadcast %cst_9 : f32 to vector<8x1xf32>
    %37 = arith.select %35, %27, %36 : vector<8x1xi1>, vector<8x1xf32>
    %c0_10 = arith.constant 0 : index
    %c0_11 = arith.constant 0 : index
    %38 = vector.load %arg4[%c0_10, %c0_11] : memref<8x128xf32, #tpu.memory_space<vmem>>, vector<8x128xf32>
    %39 = vector.shape_cast %37 : vector<8x1xf32> to vector<1x8x1xf32>
    %cst_12 = arith.constant dense<0.000000e+00> : vector<1xf32>
    %40 = vector.multi_reduction <add>, %39, %cst_12 [1, 2] : vector<1x8x1xf32> to vector<1xf32>
    %41 = vector.shape_cast %40 : vector<1xf32> to vector<1x1x1xf32>
    %42 = vector.extract %41[0, 0, 0] : f32 from vector<1x1x1xf32>
    %43 = vector.broadcast %42 : f32 to vector<8x128xf32>
    %44 = arith.addf %38, %43 : vector<8x128xf32>
    %c0_13 = arith.constant 0 : index
    %c0_14 = arith.constant 0 : index
    %45 = vector.load %arg4[%c0_13, %c0_14] : memref<8x128xf32, #tpu.memory_space<vmem>>, vector<8x128xf32>
    tpu.vector_store %arg4[%c0_13, %c0_14], %44 {strides = array<i32>} : memref<8x128xf32, #tpu.memory_space<vmem>>, vector<8x128xf32>,
    return
  }
  func.func @transform_0(%arg0: i32, %arg1: i32) -> (i32, i32) {
    %c1_i32 = arith.constant 1 : i32
    %0 = arith.muli %arg0, %c1_i32 : i32
    %1 = arith.addi %0, %arg1 : i32
    %c0_i32 = arith.constant 0 : i32
    %c0_i32_0 = arith.constant 0 : i32
    return %1, %c0_i32 : i32, i32
  }
  func.func @transform_1(%arg0: i32, %arg1: i32) -> (i32, i32) {
    %c1_i32 = arith.constant 1 : i32
    %0 = arith.muli %arg0, %c1_i32 : i32
    %1 = arith.addi %0, %arg1 : i32
    %c0_i32 = arith.constant 0 : i32
    %c0_i32_0 = arith.constant 0 : i32
    return %1, %c0_i32 : i32, i32
  }
  func.func @transform_2(%arg0: i32, %arg1: i32) -> (i32, i32) {
    %c0_i32 = arith.constant 0 : i32
    %c0_i32_0 = arith.constant 0 : i32
    return %c0_i32, %arg0 : i32, i32
  }
}

</mosaic_0001>

<llo_original>
// kernel: tpu_custom_call.1
$region0: #{tpu_custom_call.1}
  #allocation0 [shape = 'u32[]', space=smem, size = 0x4, offset = 0x4, fixed_abs, tag = 'smem constant byte address 0x4 - core index']
  #allocation1 [shape = 'u32[144,128]{1,0:T(1,128)}', space=vmem, size = 0x12000, scoped, tag = 'internal scratch']
  %s0 = inlined_call_operand.vmem [shape: f32[8,32], index: 0, kind: input, shape index: {}]
  %s1 = inlined_call_operand.vmem [shape: f32[8,2], index: 1, kind: input, shape index: {}]
  %s2 = inlined_call_operand.hbm [shape: f32[8,128], index: 2, kind: output, shape index: {}]
  %s3 = sld [smem:[#allocation0]]
  $region22: #{tpu_custom_call.1} parent=0
    _
  %s5 = ssub.s32 1, %s3
  %s6 = scalar_select 0, %s5, %s3
  $region1: #{tpu_custom_call.1} parent=0
    #allocation2 [shape = 'u8[4096]{0}', space=vmem, size = 0x1000, scoped, tag = 'output window, operand 0, single buffered']
    #allocation3 [shape = 's32[1]{0}', space=sflag, size = 0x4, scoped, tag = 'scoped memory for tpu_custom_call.1']
    %7 = vsyncpa [#allocation3], 0
    // Predicated region
    $region2: #{tpu_custom_call.1} parent=1 // pred_check
      _
    $region3: #{tpu_custom_call.1} parent=1 // pred_check_branch
      %9 = sbr.rel (0) target = $region5
    $region4: #{tpu_custom_call.1} parent=1 // pred_region
      %s10 = sadd.s32 0, 0
      %p11 = scmp.lt.s32.totalorder %s10, 0
      %s12 = scalar_select %p11, %s10, 0
      %s13 = smul.addr %s12, 8
      %s14 = scalar_lea.vmem %s0, %s13
      %s15 = sadd.s32 0, 0
    $region5: #{tpu_custom_call.1} parent=1 // pred_fallthru
      _
    // Predicated region
    $region6: #{tpu_custom_call.1} parent=1 // pred_check
      _
    $region7: #{tpu_custom_call.1} parent=1 // pred_check_branch
      %17 = sbr.rel (0) target = $region9
    $region8: #{tpu_custom_call.1} parent=1 // pred_region
      %s18 = sadd.s32 0, 0
      %p19 = scmp.lt.s32.totalorder %s18, 0
      %s20 = scalar_select %p19, %s18, 0
      %s21 = smul.addr %s20, 8
      %s22 = scalar_lea.vmem %s1, %s21
      %s23 = sadd.s32 0, 0
    $region9: #{tpu_custom_call.1} parent=1 // pred_fallthru
      _
    %s24 = sadd.s32 0, 0
    %p25 = scmp.lt.s32.totalorder %s24, 0
    %s26 = scalar_select %p25, %s24, 0
    %s27 = smul.addr %s26, 8
    %s28 = scalar_lea.vmem %s0, %s27
    %s29 = sadd.s32 0, 0
    %p30 = scmp.lt.s32.totalorder %s29, 0
    %s31 = scalar_select %p30, %s29, 0
    %s32 = smul.addr %s31, 8
    %s33 = scalar_lea.vmem %s1, %s32
    %s34 = sadd.s32 0, 0
    %p35 = scmp.lt.s32.totalorder %s34, 0
    %s36 = scalar_select %p35, %s34, 0
    %s37 = smul.addr %s36, 8
    %s38 = scalar_lea.vmem %s0, %s37
    %s39 = sadd.s32 0, 0
    %s40 = sadd.s32 0, 0
    %p41 = scmp.lt.s32.totalorder %s40, 0
    %s42 = scalar_select %p41, %s40, 0
    %s43 = smul.addr %s42, 8
    %s44 = scalar_lea.vmem %s1, %s43
    %s45 = sadd.s32 0, 0
    %p46 = scmp.eq.s32.totalorder 0, 0
    // Predicated region
    $region10: #{tpu_custom_call.1} parent=1 // pred_check
      %p47 = pneg %p46
    $region11: #{tpu_custom_call.1} parent=1 // pred_check_branch
      %49 = sbr.rel (%p47) target = $region13
    $region12: #{tpu_custom_call.1} parent=1 // pred_region
      %50 = vst [vmem:[#allocation2] sm:$0xff] 0.0
    $region13: #{tpu_custom_call.1} parent=1 // pred_fallthru
      _
    %v51 = vld [vmem:[%s38] sm:$0xff]
    %v52 = vld [vmem:[%s44] sm:$0xff]
    %vm53 = vcmask 261120
    %v54 = vsel %vm53, %v51, -inf
    %55 = vmax.xlane.f32.xlu0 %v54
    %v56 = vpop.xlane.xlu0 %55
    %v57 = vsub.f32 %v51, %v56
    %v58 = vmul.f32 %v57, 1.442695
    %v59 = vpow.pop %v58
    %v60 = vsel %vm53, %v59, 0.0
    %61 = vadd.xlane.f32.xlu0 %v60
    %v62 = vpop.xlane.xlu0 %61
    %v63 = vlog2.pop %v62
    %v64 = vmul.f32 %v63, 0.6931472
    %v65 = vsub.f32 %v52, %v56
    %v66 = vsub.f32 %v64, %v65
    %v67 = vmul.f32 %v65, 1.442695
    %v68 = vpow.pop %v67
    %v69 = vrcp.pop %v62
    %v70 = vmul.f32 %v68, %v69
    %v71 = vsub.f32 1.0, %v70
    %v72 = vmax.f32 %v71, 0.0
    %v73 = vmul.f32 %v72, %v72
    %75 = vrot.lane.b32.xlu0 %v66, 1
    %v76 = vpop.permute.xlu0 %75
    %v78 = vmul.f32 %v52, %v76
    %80 = vrot.lane.b32.xlu0 %v78, 127
    %v81 = vpop.permute.xlu0 %80
    %v83 = vmul.f32 %v73, %v81
    %s84 = sadd.s32 0, 0
    %s85 = smul.u32 %s84, 8
    %v86 = vlaneseq
    %v87 = vshrl.u32 %v86, 7
    %v88 = vstv %s85
    %v89 = vadd.s32 %v88, %v87
    %vm90 = vcmp.lt.s32.totalorder %v89, 8
    %v91 = vsel %vm90, %v83, 0.0
    %v92 = vld [vmem:[#allocation2] sm:$0xff]
    %vm93 = vcmask 7168
    %v94 = vsel %vm93, %v91, 0.0
    %95 = vadd.xlane.f32.xlu0 %v94
    %v96 = vpop.xlane.xlu0 %95
    %v97 = vrot.slane %v96, 4
    %v98 = vadd.f32 %v96, %v97
    %v99 = vrot.slane %v98, 2
    %v100 = vadd.f32 %v98, %v99
    %v101 = vrot.slane %v100, 1
    %v102 = vadd.f32 %v100, %v101
    %s103 = vtos %v102
    %v104 = vstv %s103
    %v105 = vadd.f32 %v92, %v104
    %106 = vst [vmem:[#allocation2] sm:$0xff] %v105
    // Predicated region
    $region14: #{tpu_custom_call.1} parent=1 // pred_check
      _
    $region15: #{tpu_custom_call.1} parent=1 // pred_check_branch
      %108 = sbr.rel (0) target = $region17
    $region16: #{tpu_custom_call.1} parent=1 // pred_region
      %s110 = ssub.s32 128, 128
      %111 = vsyncadd [#allocation3], %s110
      %s113 = sshll.u32 [#allocation2], 4
      %s114 = int_to_ptr.vmem [resolvable:$true] %s113
      %116 = dma.vmem_to_hbm [thread:$0]  %s114, 128, %s2, [#allocation3]
    $region17: #{tpu_custom_call.1} parent=1 // pred_fallthru
      _
    // Predicated region
    $region18: #{tpu_custom_call.1} parent=1 // pred_check
      _
    $region19: #{tpu_custom_call.1} parent=1 // pred_check_branch
      %118 = sbr.rel (0) target = $region21
    $region20: #{tpu_custom_call.1} parent=1 // pred_region
      %119 = dma.done [#allocation3], 128
    $region21: #{tpu_custom_call.1} parent=1 // pred_fallthru
      _
    %120 = vsyncpa [#allocation3], 1

</llo_original>
